<compile_context>
chip_gen: v5e
topology: v5e:2x2
jax: 0.10.0
libtpu: 0.0.40
codegen_flags: <defaults>
</compile_context>

<pallas_src>
import functools

import jax
import jax.numpy as jnp
from jax.experimental import pallas as pl
from jax.experimental.pallas import tpu as pltpu


def _product_in_kernel(z_ref, s_t_ref, wz_ref, wpf_ref, b_ref, o_ref, pflat_ref):
    """mode='in' (inner product interactions).

    z_ref:     (TB, F*E)   flattened dense signal tile
    s_t_ref:   (F, TB, E)  sparse embeds, field-major (s_t_ref[f] is a clean 2-D load)
    wz_ref:    (F*E, H)    flattened w_z   (VMEM resident)
    wpf_ref:   (F*F, H)    flattened w_p   (VMEM resident)
    b_ref:     (1, H)      bias            (VMEM resident)
    o_ref:     (TB, H)
    pflat_ref: (TB, F*F)   scratch: flattened pairwise-product matrix p
    """
    F = s_t_ref.shape[0]
    rows = [s_t_ref[f] for f in range(F)]                 # F loads of (TB, E), hoisted
    # p[b, f, g] = <s[b,f,:], s[b,g,:]>  (symmetric: compute upper triangle once)
    for f in range(F):
        for g in range(f, F):
            v = jnp.sum(rows[f] * rows[g], axis=-1, keepdims=True)   # (TB, 1)
            pflat_ref[:, f * F + g:f * F + g + 1] = v
            if g != f:
                pflat_ref[:, g * F + f:g * F + f + 1] = v
    acc = jnp.dot(z_ref[...], wz_ref[...], preferred_element_type=jnp.float32)
    acc = acc + jnp.dot(pflat_ref[...], wpf_ref[...],
                        preferred_element_type=jnp.float32)
    o_ref[...] = (acc + b_ref[...]).astype(o_ref.dtype)


def _product_out_kernel(z_ref, s_t_ref, wz_ref, wpf_ref, b_ref, o_ref, pflat_ref):
    """mode='out' (outer product of the field-summed embedding).

    wpf_ref: (E*E, H), pflat_ref: (TB, E*E); other refs as in the 'in' kernel.
    """
    F = s_t_ref.shape[0]
    E = s_t_ref.shape[2]
    fs = s_t_ref[0]
    for f in range(1, F):                                 # field sum via 2-D adds
        fs = fs + s_t_ref[f]                              # (TB, E)
    # p[b, e, e'] = fs[b, e] * fs[b, e']  -> write E lanes of flattened p per e
    for e in range(E):
        pflat_ref[:, e * E:(e + 1) * E] = fs[:, e:e + 1] * fs
    acc = jnp.dot(z_ref[...], wz_ref[...], preferred_element_type=jnp.float32)
    acc = acc + jnp.dot(pflat_ref[...], wpf_ref[...],
                        preferred_element_type=jnp.float32)
    o_ref[...] = (acc + b_ref[...]).astype(o_ref.dtype)


@functools.partial(jax.jit, static_argnames=("mode",))
def product_layer_forward(z, sparse_embeds, w_z, w_p, l_b, *, mode):
    B, F, E = sparse_embeds.shape
    H = w_z.shape[2]
    Dp = w_p.shape[0]                         # F for 'in', E for 'out'

    z_flat = z.reshape(B, -1).astype(jnp.float32)                       # (B, F*E)
    s_t = jnp.transpose(sparse_embeds.astype(jnp.float32), (1, 0, 2))   # (F, B, E)
    wz_flat = w_z.reshape(F * E, H).astype(jnp.float32)
    wp_flat = w_p.reshape(Dp * Dp, H).astype(jnp.float32)
    b2 = l_b.reshape(1, H).astype(jnp.float32)

    # Batch tile: <=128 rows keeps activations + resident weights far below even
    # v7x's 64 MiB VMEM while giving full-height MXU passes on larger batches.
    # TODO(synk): bf16 MXU inputs (f32 accumulate) for non-toy sizes on v6e/v7x.
    TB = B if B <= 128 else 128
    B_pad = -(-B // TB) * TB
    if B_pad != B:
        z_flat = jnp.pad(z_flat, ((0, B_pad - B), (0, 0)))
        s_t = jnp.pad(s_t, ((0, 0), (0, B_pad - B), (0, 0)))

    kernel = _product_in_kernel if mode == "in" else _product_out_kernel

    out = pl.pallas_call(
        kernel,
        out_shape=jax.ShapeDtypeStruct((B_pad, H), jnp.float32),
        grid=(B_pad // TB,),
        in_specs=[
            pl.BlockSpec((TB, F * E), lambda i: (i, 0)),     # activations: batch-tiled
            pl.BlockSpec((F, TB, E), lambda i: (0, i, 0)),   # sparse embeds: batch-tiled
            pl.BlockSpec((F * E, H), lambda i: (0, 0)),      # weights: VMEM resident
            pl.BlockSpec((Dp * Dp, H), lambda i: (0, 0)),    # weights: VMEM resident
            pl.BlockSpec((1, H), lambda i: (0, 0)),          # bias:    VMEM resident
        ],
        out_specs=pl.BlockSpec((TB, H), lambda i: (i, 0)),
        scratch_shapes=[pltpu.VMEM((TB, Dp * Dp), jnp.float32)],
        compiler_params=pltpu.CompilerParams(
            dimension_semantics=("parallel",)),
    )(z_flat, s_t, wz_flat, wp_flat, b2)
    return out[:B]


class ProductLayer:
    """JAX/Pallas port of ML_Pytorch/models/PNN.py::ProductLayer (forward only)."""

    def __init__(self, mode, embed_dim, field_num, hidden_units,
                 key=jax.random.PRNGKey(0)):
        assert mode in ("in", "out")
        self.mode = mode
        H = hidden_units[0]
        k_wz, k_wp, k_b = jax.random.split(key, 3)
        # torch.rand -> U[0, 1)
        self.w_z = jax.random.uniform(k_wz, (field_num, embed_dim, H), jnp.float32)
        if mode == "in":
            self.w_p = jax.random.uniform(k_wp, (field_num, field_num, H), jnp.float32)
        else:
            self.w_p = jax.random.uniform(k_wp, (embed_dim, embed_dim, H), jnp.float32)
        self.l_b = jax.random.uniform(k_b, (H,), jnp.float32)

    def __call__(self, z, sparse_embeds):
        return product_layer_forward(z, sparse_embeds, self.w_z, self.w_p,
                                     self.l_b, mode=self.mode)


def _ref_forward(model, z, sparse_embeds):
    """Pure-JAX reference, literal translation of the PyTorch forward."""
    hp = jax.lax.Precision.HIGHEST
    B = z.shape[0]
    H = model.w_z.shape[2]
    l_z = jnp.matmul(z.reshape(B, -1),
                     jnp.transpose(model.w_z, (2, 0, 1)).reshape(H, -1).T,
                     precision=hp)
    if model.mode == "in":
        p = jnp.matmul(sparse_embeds, jnp.transpose(sparse_embeds, (0, 2, 1)),
                       precision=hp)
    else:
        f_sum = jnp.sum(sparse_embeds, axis=1, keepdims=True)
        p = jnp.matmul(jnp.transpose(f_sum, (0, 2, 1)), f_sum, precision=hp)
    l_p = jnp.matmul(p.reshape(B, -1),
                     jnp.transpose(model.w_p, (2, 0, 1)).reshape(H, -1).T,
                     precision=hp)
    return l_p + l_z + model.l_b


if __name__ == "__main__":
    key = jax.random.PRNGKey(0)
    batch, field_num, embed_dim = 8, 8, 16
    hidden_units = [128]                       # lane-dense output (H = 128)

    k_z, k_s, k_in, k_out = jax.random.split(key, 4)
    z = jax.random.normal(k_z, (batch, field_num, embed_dim), jnp.float32)
    sparse_embeds = jax.random.normal(k_s, (batch, field_num, embed_dim), jnp.float32)

    for mode, k in (("in", k_in), ("out", k_out)):
        model = ProductLayer(mode, embed_dim, field_num, hidden_units, key=k)
        out = jax.block_until_ready(model(z, sparse_embeds))
        ref = _ref_forward(model, z, sparse_embeds)
        assert out.shape == (batch, hidden_units[0]), (mode, out.shape)
        assert jnp.allclose(out, ref, rtol=2e-2, atol=1e-2), f"mismatch in mode={mode}"

    print("KERNEL_OK")
</pallas_src>

<mosaic_0001>
module attributes {stable_mosaic.version = 11 : i64} {
  func.func @_product_in_kernel(%arg0: i32, %arg1: memref<8x128xf32, #tpu.memory_space<vmem>>, %arg2: memref<8x8x16xf32, #tpu.memory_space<vmem>>, %arg3: memref<128x128xf32, #tpu.memory_space<vmem>>, %arg4: memref<64x128xf32, #tpu.memory_space<vmem>>, %arg5: memref<1x128xf32, #tpu.memory_space<vmem>>, %arg6: memref<8x128xf32, #tpu.memory_space<vmem>>, %arg7: memref<8x64xf32, #tpu.memory_space<vmem>>) attributes {dimension_semantics = [#tpu.dimension_semantics<parallel>], iteration_bounds = array<i64: 1>, scalar_prefetch = 0 : i64, scratch_operands = 1 : i64, tpu.core_type = #tpu.core_type<tc>, window_params = [{transform_indices = @transform_0, window_bounds = array<i64: 8, 128>}, {transform_indices = @transform_1, window_bounds = array<i64: 8, 8, 16>}, {pipeline_mode = #tpu.pipeline_mode<synchronous>, transform_indices = @transform_2, window_bounds = array<i64: 128, 128>}, {pipeline_mode = #tpu.pipeline_mode<synchronous>, transform_indices = @transform_3, window_bounds = array<i64: 64, 128>}, {pipeline_mode = #tpu.pipeline_mode<synchronous>, transform_indices = @transform_4, window_bounds = array<i64: 1, 128>}, {transform_indices = @transform_5, window_bounds = array<i64: 8, 128>}]} {
    %c0 = arith.constant 0 : index
    %c0_0 = arith.constant 0 : index
    %c0_1 = arith.constant 0 : index
    %0 = vector.load %arg2[%c0, %c0_0, %c0_1] : memref<8x8x16xf32, #tpu.memory_space<vmem>>, vector<1x8x16xf32>
    %1 = vector.shape_cast %0 : vector<1x8x16xf32> to vector<8x16xf32>
    %c1 = arith.constant 1 : index
    %c0_2 = arith.constant 0 : index
    %c0_3 = arith.constant 0 : index
    %2 = vector.load %arg2[%c1, %c0_2, %c0_3] : memref<8x8x16xf32, #tpu.memory_space<vmem>>, vector<1x8x16xf32>
    %3 = vector.shape_cast %2 : vector<1x8x16xf32> to vector<8x16xf32>
    %c2 = arith.constant 2 : index
    %c0_4 = arith.constant 0 : index
    %c0_5 = arith.constant 0 : index
    %4 = vector.load %arg2[%c2, %c0_4, %c0_5] : memref<8x8x16xf32, #tpu.memory_space<vmem>>, vector<1x8x16xf32>
    %5 = vector.shape_cast %4 : vector<1x8x16xf32> to vector<8x16xf32>
    %c3 = arith.constant 3 : index
    %c0_6 = arith.constant 0 : index
    %c0_7 = arith.constant 0 : index
    %6 = vector.load %arg2[%c3, %c0_6, %c0_7] : memref<8x8x16xf32, #tpu.memory_space<vmem>>, vector<1x8x16xf32>
    %7 = vector.shape_cast %6 : vector<1x8x16xf32> to vector<8x16xf32>
    %c4 = arith.constant 4 : index
    %c0_8 = arith.constant 0 : index
    %c0_9 = arith.constant 0 : index
    %8 = vector.load %arg2[%c4, %c0_8, %c0_9] : memref<8x8x16xf32, #tpu.memory_space<vmem>>, vector<1x8x16xf32>
    %9 = vector.shape_cast %8 : vector<1x8x16xf32> to vector<8x16xf32>
    %c5 = arith.constant 5 : index
    %c0_10 = arith.constant 0 : index
    %c0_11 = arith.constant 0 : index
    %10 = vector.load %arg2[%c5, %c0_10, %c0_11] : memref<8x8x16xf32, #tpu.memory_space<vmem>>, vector<1x8x16xf32>
    %11 = vector.shape_cast %10 : vector<1x8x16xf32> to vector<8x16xf32>
    %c6 = arith.constant 6 : index
    %c0_12 = arith.constant 0 : index
    %c0_13 = arith.constant 0 : index
    %12 = vector.load %arg2[%c6, %c0_12, %c0_13] : memref<8x8x16xf32, #tpu.memory_space<vmem>>, vector<1x8x16xf32>
    %13 = vector.shape_cast %12 : vector<1x8x16xf32> to vector<8x16xf32>
    %c7 = arith.constant 7 : index
    %c0_14 = arith.constant 0 : index
    %c0_15 = arith.constant 0 : index
    %14 = vector.load %arg2[%c7, %c0_14, %c0_15] : memref<8x8x16xf32, #tpu.memory_space<vmem>>, vector<1x8x16xf32>
    %15 = vector.shape_cast %14 : vector<1x8x16xf32> to vector<8x16xf32>
    %16 = arith.mulf %1, %1 : vector<8x16xf32>
    %cst = arith.constant dense<0.000000e+00> : vector<8xf32>
    %17 = vector.multi_reduction <add>, %16, %cst [1] : vector<8x16xf32> to vector<8xf32>
    %18 = vector.shape_cast %17 : vector<8xf32> to vector<8x1xf32>
    %c0_16 = arith.constant 0 : index
    %c0_17 = arith.constant 0 : index
    %19 = vector.load %arg7[%c0_16, %c0_17] : memref<8x64xf32, #tpu.memory_space<vmem>>, vector<8x1xf32>
    tpu.vector_store %arg7[%c0_16, %c0_17], %18 {strides = array<i32>} : memref<8x64xf32, #tpu.memory_space<vmem>>, vector<8x1xf32>,
    %20 = arith.mulf %1, %3 : vector<8x16xf32>
    %cst_18 = arith.constant dense<0.000000e+00> : vector<8xf32>
    %21 = vector.multi_reduction <add>, %20, %cst_18 [1] : vector<8x16xf32> to vector<8xf32>
    %22 = vector.shape_cast %21 : vector<8xf32> to vector<8x1xf32>
    %c0_19 = arith.constant 0 : index
    %c1_20 = arith.constant 1 : index
    %23 = vector.load %arg7[%c0_19, %c1_20] : memref<8x64xf32, #tpu.memory_space<vmem>>, vector<8x1xf32>
    tpu.vector_store %arg7[%c0_19, %c1_20], %22 {strides = array<i32>} : memref<8x64xf32, #tpu.memory_space<vmem>>, vector<8x1xf32>,
    %c0_21 = arith.constant 0 : index
    %c8 = arith.constant 8 : index
    %24 = vector.load %arg7[%c0_21, %c8] : memref<8x64xf32, #tpu.memory_space<vmem>>, vector<8x1xf32>
    tpu.vector_store %arg7[%c0_21, %c8], %22 {strides = array<i32>} : memref<8x64xf32, #tpu.memory_space<vmem>>, vector<8x1xf32>,
    %25 = arith.mulf %1, %5 : vector<8x16xf32>
    %cst_22 = arith.constant dense<0.000000e+00> : vector<8xf32>
    %26 = vector.multi_reduction <add>, %25, %cst_22 [1] : vector<8x16xf32> to vector<8xf32>
    %27 = vector.shape_cast %26 : vector<8xf32> to vector<8x1xf32>
    %c0_23 = arith.constant 0 : index
    %c2_24 = arith.constant 2 : index
    %28 = vector.load %arg7[%c0_23, %c2_24] : memref<8x64xf32, #tpu.memory_space<vmem>>, vector<8x1xf32>
    tpu.vector_store %arg7[%c0_23, %c2_24], %27 {strides = array<i32>} : memref<8x64xf32, #tpu.memory_space<vmem>>, vector<8x1xf32>,
    %c0_25 = arith.constant 0 : index
    %c16 = arith.constant 16 : index
    %29 = vector.load %arg7[%c0_25, %c16] : memref<8x64xf32, #tpu.memory_space<vmem>>, vector<8x1xf32>
    tpu.vector_store %arg7[%c0_25, %c16], %27 {strides = array<i32>} : memref<8x64xf32, #tpu.memory_space<vmem>>, vector<8x1xf32>,
    %30 = arith.mulf %1, %7 : vector<8x16xf32>
    %cst_26 = arith.constant dense<0.000000e+00> : vector<8xf32>
    %31 = vector.multi_reduction <add>, %30, %cst_26 [1] : vector<8x16xf32> to vector<8xf32>
    %32 = vector.shape_cast %31 : vector<8xf32> to vector<8x1xf32>
    %c0_27 = arith.constant 0 : index
    %c3_28 = arith.constant 3 : index
    %33 = vector.load %arg7[%c0_27, %c3_28] : memref<8x64xf32, #tpu.memory_space<vmem>>, vector<8x1xf32>
    tpu.vector_store %arg7[%c0_27, %c3_28], %32 {strides = array<i32>} : memref<8x64xf32, #tpu.memory_space<vmem>>, vector<8x1xf32>,
    %c0_29 = arith.constant 0 : index
    %c24 = arith.constant 24 : index
    %34 = vector.load %arg7[%c0_29, %c24] : memref<8x64xf32, #tpu.memory_space<vmem>>, vector<8x1xf32>
    tpu.vector_store %arg7[%c0_29, %c24], %32 {strides = array<i32>} : memref<8x64xf32, #tpu.memory_space<vmem>>, vector<8x1xf32>,
    %35 = arith.mulf %1, %9 : vector<8x16xf32>
    %cst_30 = arith.constant dense<0.000000e+00> : vector<8xf32>
    %36 = vector.multi_reduction <add>, %35, %cst_30 [1] : vector<8x16xf32> to vector<8xf32>
    %37 = vector.shape_cast %36 : vector<8xf32> to vector<8x1xf32>
    %c0_31 = arith.constant 0 : index
    %c4_32 = arith.constant 4 : index
    %38 = vector.load %arg7[%c0_31, %c4_32] : memref<8x64xf32, #tpu.memory_space<vmem>>, vector<8x1xf32>
    tpu.vector_store %arg7[%c0_31, %c4_32], %37 {strides = array<i32>} : memref<8x64xf32, #tpu.memory_space<vmem>>, vector<8x1xf32>,
    %c0_33 = arith.constant 0 : index
    %c32 = arith.constant 32 : index
    %39 = vector.load %arg7[%c0_33, %c32] : memref<8x64xf32, #tpu.memory_space<vmem>>, vector<8x1xf32>
    tpu.vector_store %arg7[%c0_33, %c32], %37 {strides = array<i32>} : memref<8x64xf32, #tpu.memory_space<vmem>>, vector<8x1xf32>,
    %40 = arith.mulf %1, %11 : vector<8x16xf32>
    %cst_34 = arith.constant dense<0.000000e+00> : vector<8xf32>
    %41 = vector.multi_reduction <add>, %40, %cst_34 [1] : vector<8x16xf32> to vector<8xf32>
    %42 = vector.shape_cast %41 : vector<8xf32> to vector<8x1xf32>
    %c0_35 = arith.constant 0 : index
    %c5_36 = arith.constant 5 : index
    %43 = vector.load %arg7[%c0_35, %c5_36] : memref<8x64xf32, #tpu.memory_space<vmem>>, vector<8x1xf32>
    tpu.vector_store %arg7[%c0_35, %c5_36], %42 {strides = array<i32>} : memref<8x64xf32, #tpu.memory_space<vmem>>, vector<8x1xf32>,
    %c0_37 = arith.constant 0 : index
    %c40 = arith.constant 40 : index
    %44 = vector.load %arg7[%c0_37, %c40] : memref<8x64xf32, #tpu.memory_space<vmem>>, vector<8x1xf32>
    tpu.vector_store %arg7[%c0_37, %c40], %42 {strides = array<i32>} : memref<8x64xf32, #tpu.memory_space<vmem>>, vector<8x1xf32>,
    %45 = arith.mulf %1, %13 : vector<8x16xf32>
    %cst_38 = arith.constant dense<0.000000e+00> : vector<8xf32>
    %46 = vector.multi_reduction <add>, %45, %cst_38 [1] : vector<8x16xf32> to vector<8xf32>
    %47 = vector.shape_cast %46 : vector<8xf32> to vector<8x1xf32>
    %c0_39 = arith.constant 0 : index
    %c6_40 = arith.constant 6 : index
    %48 = vector.load %arg7[%c0_39, %c6_40] : memref<8x64xf32, #tpu.memory_space<vmem>>, vector<8x1xf32>
    tpu.vector_store %arg7[%c0_39, %c6_40], %47 {strides = array<i32>} : memref<8x64xf32, #tpu.memory_space<vmem>>, vector<8x1xf32>,
    %c0_41 = arith.constant 0 : index
    %c48 = arith.constant 48 : index
    %49 = vector.load %arg7[%c0_41, %c48] : memref<8x64xf32, #tpu.memory_space<vmem>>, vector<8x1xf32>
    tpu.vector_store %arg7[%c0_41, %c48], %47 {strides = array<i32>} : memref<8x64xf32, #tpu.memory_space<vmem>>, vector<8x1xf32>,
    %50 = arith.mulf %1, %15 : vector<8x16xf32>
    %cst_42 = arith.constant dense<0.000000e+00> : vector<8xf32>
    %51 = vector.multi_reduction <add>, %50, %cst_42 [1] : vector<8x16xf32> to vector<8xf32>
    %52 = vector.shape_cast %51 : vector<8xf32> to vector<8x1xf32>
    %c0_43 = arith.constant 0 : index
    %c7_44 = arith.constant 7 : index
    %53 = vector.load %arg7[%c0_43, %c7_44] : memref<8x64xf32, #tpu.memory_space<vmem>>, vector<8x1xf32>
    tpu.vector_store %arg7[%c0_43, %c7_44], %52 {strides = array<i32>} : memref<8x64xf32, #tpu.memory_space<vmem>>, vector<8x1xf32>,
    %c0_45 = arith.constant 0 : index
    %c56 = arith.constant 56 : index
    %54 = vector.load %arg7[%c0_45, %c56] : memref<8x64xf32, #tpu.memory_space<vmem>>, vector<8x1xf32>
    tpu.vector_store %arg7[%c0_45, %c56], %52 {strides = array<i32>} : memref<8x64xf32, #tpu.memory_space<vmem>>, vector<8x1xf32>,
    %55 = arith.mulf %3, %3 : vector<8x16xf32>
    %cst_46 = arith.constant dense<0.000000e+00> : vector<8xf32>
    %56 = vector.multi_reduction <add>, %55, %cst_46 [1] : vector<8x16xf32> to vector<8xf32>
    %57 = vector.shape_cast %56 : vector<8xf32> to vector<8x1xf32>
    %c0_47 = arith.constant 0 : index
    %c9 = arith.constant 9 : index
    %58 = vector.load %arg7[%c0_47, %c9] : memref<8x64xf32, #tpu.memory_space<vmem>>, vector<8x1xf32>
    tpu.vector_store %arg7[%c0_47, %c9], %57 {strides = array<i32>} : memref<8x64xf32, #tpu.memory_space<vmem>>, vector<8x1xf32>,
    %59 = arith.mulf %3, %5 : vector<8x16xf32>
    %cst_48 = arith.constant dense<0.000000e+00> : vector<8xf32>
    %60 = vector.multi_reduction <add>, %59, %cst_48 [1] : vector<8x16xf32> to vector<8xf32>
    %61 = vector.shape_cast %60 : vector<8xf32> to vector<8x1xf32>
    %c0_49 = arith.constant 0 : index
    %c10 = arith.constant 10 : index
    %62 = vector.load %arg7[%c0_49, %c10] : memref<8x64xf32, #tpu.memory_space<vmem>>, vector<8x1xf32>
    tpu.vector_store %arg7[%c0_49, %c10], %61 {strides = array<i32>} : memref<8x64xf32, #tpu.memory_space<vmem>>, vector<8x1xf32>,
    %c0_50 = arith.constant 0 : index
    %c17 = arith.constant 17 : index
    %63 = vector.load %arg7[%c0_50, %c17] : memref<8x64xf32, #tpu.memory_space<vmem>>, vector<8x1xf32>
    tpu.vector_store %arg7[%c0_50, %c17], %61 {strides = array<i32>} : memref<8x64xf32, #tpu.memory_space<vmem>>, vector<8x1xf32>,
    %64 = arith.mulf %3, %7 : vector<8x16xf32>
    %cst_51 = arith.constant dense<0.000000e+00> : vector<8xf32>
    %65 = vector.multi_reduction <add>, %64, %cst_51 [1] : vector<8x16xf32> to vector<8xf32>
    %66 = vector.shape_cast %65 : vector<8xf32> to vector<8x1xf32>
    %c0_52 = arith.constant 0 : index
    %c11 = arith.constant 11 : index
    %67 = vector.load %arg7[%c0_52, %c11] : memref<8x64xf32, #tpu.memory_space<vmem>>, vector<8x1xf32>
    tpu.vector_store %arg7[%c0_52, %c11], %66 {strides = array<i32>} : memref<8x64xf32, #tpu.memory_space<vmem>>, vector<8x1xf32>,
    %c0_53 = arith.constant 0 : index
    %c25 = arith.constant 25 : index
    %68 = vector.load %arg7[%c0_53, %c25] : memref<8x64xf32, #tpu.memory_space<vmem>>, vector<8x1xf32>
    tpu.vector_store %arg7[%c0_53, %c25], %66 {strides = array<i32>} : memref<8x64xf32, #tpu.memory_space<vmem>>, vector<8x1xf32>,
    %69 = arith.mulf %3, %9 : vector<8x16xf32>
    %cst_54 = arith.constant dense<0.000000e+00> : vector<8xf32>
    %70 = vector.multi_reduction <add>, %69, %cst_54 [1] : vector<8x16xf32> to vector<8xf32>
    %71 = vector.shape_cast %70 : vector<8xf32> to vector<8x1xf32>
    %c0_55 = arith.constant 0 : index
    %c12 = arith.constant 12 : index
    %72 = vector.load %arg7[%c0_55, %c12] : memref<8x64xf32, #tpu.memory_space<vmem>>, vector<8x1xf32>
    tpu.vector_store %arg7[%c0_55, %c12], %71 {strides = array<i32>} : memref<8x64xf32, #tpu.memory_space<vmem>>, vector<8x1xf32>,
    %c0_56 = arith.constant 0 : index
    %c33 = arith.constant 33 : index
    %73 = vector.load %arg7[%c0_56, %c33] : memref<8x64xf32, #tpu.memory_space<vmem>>, vector<8x1xf32>
    tpu.vector_store %arg7[%c0_56, %c33], %71 {strides = array<i32>} : memref<8x64xf32, #tpu.memory_space<vmem>>, vector<8x1xf32>,
    %74 = arith.mulf %3, %11 : vector<8x16xf32>
    %cst_57 = arith.constant dense<0.000000e+00> : vector<8xf32>
    %75 = vector.multi_reduction <add>, %74, %cst_57 [1] : vector<8x16xf32> to vector<8xf32>
    %76 = vector.shape_cast %75 : vector<8xf32> to vector<8x1xf32>
    %c0_58 = arith.constant 0 : index
    %c13 = arith.constant 13 : index
    %77 = vector.load %arg7[%c0_58, %c13] : memref<8x64xf32, #tpu.memory_space<vmem>>, vector<8x1xf32>
    tpu.vector_store %arg7[%c0_58, %c13], %76 {strides = array<i32>} : memref<8x64xf32, #tpu.memory_space<vmem>>, vector<8x1xf32>,
    %c0_59 = arith.constant 0 : index
    %c41 = arith.constant 41 : index
    %78 = vector.load %arg7[%c0_59, %c41] : memref<8x64xf32, #tpu.memory_space<vmem>>, vector<8x1xf32>
    tpu.vector_store %arg7[%c0_59, %c41], %76 {strides = array<i32>} : memref<8x64xf32, #tpu.memory_space<vmem>>, vector<8x1xf32>,
    %79 = arith.mulf %3, %13 : vector<8x16xf32>
    %cst_60 = arith.constant dense<0.000000e+00> : vector<8xf32>
    %80 = vector.multi_reduction <add>, %79, %cst_60 [1] : vector<8x16xf32> to vector<8xf32>
    %81 = vector.shape_cast %80 : vector<8xf32> to vector<8x1xf32>
    %c0_61 = arith.constant 0 : index
    %c14 = arith.constant 14 : index
    %82 = vector.load %arg7[%c0_61, %c14] : memref<8x64xf32, #tpu.memory_space<vmem>>, vector<8x1xf32>
    tpu.vector_store %arg7[%c0_61, %c14], %81 {strides = array<i32>} : memref<8x64xf32, #tpu.memory_space<vmem>>, vector<8x1xf32>,
    %c0_62 = arith.constant 0 : index
    %c49 = arith.constant 49 : index
    %83 = vector.load %arg7[%c0_62, %c49] : memref<8x64xf32, #tpu.memory_space<vmem>>, vector<8x1xf32>
    tpu.vector_store %arg7[%c0_62, %c49], %81 {strides = array<i32>} : memref<8x64xf32, #tpu.memory_space<vmem>>, vector<8x1xf32>,
    %84 = arith.mulf %3, %15 : vector<8x16xf32>
    %cst_63 = arith.constant dense<0.000000e+00> : vector<8xf32>
    %85 = vector.multi_reduction <add>, %84, %cst_63 [1] : vector<8x16xf32> to vector<8xf32>
    %86 = vector.shape_cast %85 : vector<8xf32> to vector<8x1xf32>
    %c0_64 = arith.constant 0 : index
    %c15 = arith.constant 15 : index
    %87 = vector.load %arg7[%c0_64, %c15] : memref<8x64xf32, #tpu.memory_space<vmem>>, vector<8x1xf32>
    tpu.vector_store %arg7[%c0_64, %c15], %86 {strides = array<i32>} : memref<8x64xf32, #tpu.memory_space<vmem>>, vector<8x1xf32>,
    %c0_65 = arith.constant 0 : index
    %c57 = arith.constant 57 : index
    %88 = vector.load %arg7[%c0_65, %c57] : memref<8x64xf32, #tpu.memory_space<vmem>>, vector<8x1xf32>
    tpu.vector_store %arg7[%c0_65, %c57], %86 {strides = array<i32>} : memref<8x64xf32, #tpu.memory_space<vmem>>, vector<8x1xf32>,
    %89 = arith.mulf %5, %5 : vector<8x16xf32>
    %cst_66 = arith.constant dense<0.000000e+00> : vector<8xf32>
    %90 = vector.multi_reduction <add>, %89, %cst_66 [1] : vector<8x16xf32> to vector<8xf32>
    %91 = vector.shape_cast %90 : vector<8xf32> to vector<8x1xf32>
    %c0_67 = arith.constant 0 : index
    %c18 = arith.constant 18 : index
    %92 = vector.load %arg7[%c0_67, %c18] : memref<8x64xf32, #tpu.memory_space<vmem>>, vector<8x1xf32>
    tpu.vector_store %arg7[%c0_67, %c18], %91 {strides = array<i32>} : memref<8x64xf32, #tpu.memory_space<vmem>>, vector<8x1xf32>,
    %93 = arith.mulf %5, %7 : vector<8x16xf32>
    %cst_68 = arith.constant dense<0.000000e+00> : vector<8xf32>
    %94 = vector.multi_reduction <add>, %93, %cst_68 [1] : vector<8x16xf32> to vector<8xf32>
    %95 = vector.shape_cast %94 : vector<8xf32> to vector<8x1xf32>
    %c0_69 = arith.constant 0 : index
    %c19 = arith.constant 19 : index
    %96 = vector.load %arg7[%c0_69, %c19] : memref<8x64xf32, #tpu.memory_space<vmem>>, vector<8x1xf32>
    tpu.vector_store %arg7[%c0_69, %c19], %95 {strides = array<i32>} : memref<8x64xf32, #tpu.memory_space<vmem>>, vector<8x1xf32>,
    %c0_70 = arith.constant 0 : index
    %c26 = arith.constant 26 : index
    %97 = vector.load %arg7[%c0_70, %c26] : memref<8x64xf32, #tpu.memory_space<vmem>>, vector<8x1xf32>
    tpu.vector_store %arg7[%c0_70, %c26], %95 {strides = array<i32>} : memref<8x64xf32, #tpu.memory_space<vmem>>, vector<8x1xf32>,
    %98 = arith.mulf %5, %9 : vector<8x16xf32>
    %cst_71 = arith.constant dense<0.000000e+00> : vector<8xf32>
    %99 = vector.multi_reduction <add>, %98, %cst_71 [1] : vector<8x16xf32> to vector<8xf32>
    %100 = vector.shape_cast %99 : vector<8xf32> to vector<8x1xf32>
    %c0_72 = arith.constant 0 : index
    %c20 = arith.constant 20 : index
    %101 = vector.load %arg7[%c0_72, %c20] : memref<8x64xf32, #tpu.memory_space<vmem>>, vector<8x1xf32>
    tpu.vector_store %arg7[%c0_72, %c20], %100 {strides = array<i32>} : memref<8x64xf32, #tpu.memory_space<vmem>>, vector<8x1xf32>,
    %c0_73 = arith.constant 0 : index
    %c34 = arith.constant 34 : index
    %102 = vector.load %arg7[%c0_73, %c34] : memref<8x64xf32, #tpu.memory_space<vmem>>, vector<8x1xf32>
    tpu.vector_store %arg7[%c0_73, %c34], %100 {strides = array<i32>} : memref<8x64xf32, #tpu.memory_space<vmem>>, vector<8x1xf32>,
    %103 = arith.mulf %5, %11 : vector<8x16xf32>
    %cst_74 = arith.constant dense<0.000000e+00> : vector<8xf32>
    %104 = vector.multi_reduction <add>, %103, %cst_74 [1] : vector<8x16xf32> to vector<8xf32>
    %105 = vector.shape_cast %104 : vector<8xf32> to vector<8x1xf32>
    %c0_75 = arith.constant 0 : index
    %c21 = arith.constant 21 : index
    %106 = vector.load %arg7[%c0_75, %c21] : memref<8x64xf32, #tpu.memory_space<vmem>>, vector<8x1xf32>
    tpu.vector_store %arg7[%c0_75, %c21], %105 {strides = array<i32>} : memref<8x64xf32, #tpu.memory_space<vmem>>, vector<8x1xf32>,
    %c0_76 = arith.constant 0 : index
    %c42 = arith.constant 42 : index
    %107 = vector.load %arg7[%c0_76, %c42] : memref<8x64xf32, #tpu.memory_space<vmem>>, vector<8x1xf32>
    tpu.vector_store %arg7[%c0_76, %c42], %105 {strides = array<i32>} : memref<8x64xf32, #tpu.memory_space<vmem>>, vector<8x1xf32>,
    %108 = arith.mulf %5, %13 : vector<8x16xf32>
    %cst_77 = arith.constant dense<0.000000e+00> : vector<8xf32>
    %109 = vector.multi_reduction <add>, %108, %cst_77 [1] : vector<8x16xf32> to vector<8xf32>
    %110 = vector.shape_cast %109 : vector<8xf32> to vector<8x1xf32>
    %c0_78 = arith.constant 0 : index
    %c22 = arith.constant 22 : index
    %111 = vector.load %arg7[%c0_78, %c22] : memref<8x64xf32, #tpu.memory_space<vmem>>, vector<8x1xf32>
    tpu.vector_store %arg7[%c0_78, %c22], %110 {strides = array<i32>} : memref<8x64xf32, #tpu.memory_space<vmem>>, vector<8x1xf32>,
    %c0_79 = arith.constant 0 : index
    %c50 = arith.constant 50 : index
    %112 = vector.load %arg7[%c0_79, %c50] : memref<8x64xf32, #tpu.memory_space<vmem>>, vector<8x1xf32>
    tpu.vector_store %arg7[%c0_79, %c50], %110 {strides = array<i32>} : memref<8x64xf32, #tpu.memory_space<vmem>>, vector<8x1xf32>,
    %113 = arith.mulf %5, %15 : vector<8x16xf32>
    %cst_80 = arith.constant dense<0.000000e+00> : vector<8xf32>
    %114 = vector.multi_reduction <add>, %113, %cst_80 [1] : vector<8x16xf32> to vector<8xf32>
    %115 = vector.shape_cast %114 : vector<8xf32> to vector<8x1xf32>
    %c0_81 = arith.constant 0 : index
    %c23 = arith.constant 23 : index
    %116 = vector.load %arg7[%c0_81, %c23] : memref<8x64xf32, #tpu.memory_space<vmem>>, vector<8x1xf32>
    tpu.vector_store %arg7[%c0_81, %c23], %115 {strides = array<i32>} : memref<8x64xf32, #tpu.memory_space<vmem>>, vector<8x1xf32>,
    %c0_82 = arith.constant 0 : index
    %c58 = arith.constant 58 : index
    %117 = vector.load %arg7[%c0_82, %c58] : memref<8x64xf32, #tpu.memory_space<vmem>>, vector<8x1xf32>
    tpu.vector_store %arg7[%c0_82, %c58], %115 {strides = array<i32>} : memref<8x64xf32, #tpu.memory_space<vmem>>, vector<8x1xf32>,
    %118 = arith.mulf %7, %7 : vector<8x16xf32>
    %cst_83 = arith.constant dense<0.000000e+00> : vector<8xf32>
    %119 = vector.multi_reduction <add>, %118, %cst_83 [1] : vector<8x16xf32> to vector<8xf32>
    %120 = vector.shape_cast %119 : vector<8xf32> to vector<8x1xf32>
    %c0_84 = arith.constant 0 : index
    %c27 = arith.constant 27 : index
    %121 = vector.load %arg7[%c0_84, %c27] : memref<8x64xf32, #tpu.memory_space<vmem>>, vector<8x1xf32>
    tpu.vector_store %arg7[%c0_84, %c27], %120 {strides = array<i32>} : memref<8x64xf32, #tpu.memory_space<vmem>>, vector<8x1xf32>,
    %122 = arith.mulf %7, %9 : vector<8x16xf32>
    %cst_85 = arith.constant dense<0.000000e+00> : vector<8xf32>
    %123 = vector.multi_reduction <add>, %122, %cst_85 [1] : vector<8x16xf32> to vector<8xf32>
    %124 = vector.shape_cast %123 : vector<8xf32> to vector<8x1xf32>
    %c0_86 = arith.constant 0 : index
    %c28 = arith.constant 28 : index
    %125 = vector.load %arg7[%c0_86, %c28] : memref<8x64xf32, #tpu.memory_space<vmem>>, vector<8x1xf32>
    tpu.vector_store %arg7[%c0_86, %c28], %124 {strides = array<i32>} : memref<8x64xf32, #tpu.memory_space<vmem>>, vector<8x1xf32>,
    %c0_87 = arith.constant 0 : index
    %c35 = arith.constant 35 : index
    %126 = vector.load %arg7[%c0_87, %c35] : memref<8x64xf32, #tpu.memory_space<vmem>>, vector<8x1xf32>
    tpu.vector_store %arg7[%c0_87, %c35], %124 {strides = array<i32>} : memref<8x64xf32, #tpu.memory_space<vmem>>, vector<8x1xf32>,
    %127 = arith.mulf %7, %11 : vector<8x16xf32>
    %cst_88 = arith.constant dense<0.000000e+00> : vector<8xf32>
    %128 = vector.multi_reduction <add>, %127, %cst_88 [1] : vector<8x16xf32> to vector<8xf32>
    %129 = vector.shape_cast %128 : vector<8xf32> to vector<8x1xf32>
    %c0_89 = arith.constant 0 : index
    %c29 = arith.constant 29 : index
    %130 = vector.load %arg7[%c0_89, %c29] : memref<8x64xf32, #tpu.memory_space<vmem>>, vector<8x1xf32>
    tpu.vector_store %arg7[%c0_89, %c29], %129 {strides = array<i32>} : memref<8x64xf32, #tpu.memory_space<vmem>>, vector<8x1xf32>,
    %c0_90 = arith.constant 0 : index
    %c43 = arith.constant 43 : index
    %131 = vector.load %arg7[%c0_90, %c43] : memref<8x64xf32, #tpu.memory_space<vmem>>, vector<8x1xf32>
    tpu.vector_store %arg7[%c0_90, %c43], %129 {strides = array<i32>} : memref<8x64xf32, #tpu.memory_space<vmem>>, vector<8x1xf32>,
    %132 = arith.mulf %7, %13 : vector<8x16xf32>
    %cst_91 = arith.constant dense<0.000000e+00> : vector<8xf32>
    %133 = vector.multi_reduction <add>, %132, %cst_91 [1] : vector<8x16xf32> to vector<8xf32>
    %134 = vector.shape_cast %133 : vector<8xf32> to vector<8x1xf32>
    %c0_92 = arith.constant 0 : index
    %c30 = arith.constant 30 : index
    %135 = vector.load %arg7[%c0_92, %c30] : memref<8x64xf32, #tpu.memory_space<vmem>>, vector<8x1xf32>
    tpu.vector_store %arg7[%c0_92, %c30], %134 {strides = array<i32>} : memref<8x64xf32, #tpu.memory_space<vmem>>, vector<8x1xf32>,
    %c0_93 = arith.constant 0 : index
    %c51 = arith.constant 51 : index
    %136 = vector.load %arg7[%c0_93, %c51] : memref<8x64xf32, #tpu.memory_space<vmem>>, vector<8x1xf32>
    tpu.vector_store %arg7[%c0_93, %c51], %134 {strides = array<i32>} : memref<8x64xf32, #tpu.memory_space<vmem>>, vector<8x1xf32>,
    %137 = arith.mulf %7, %15 : vector<8x16xf32>
    %cst_94 = arith.constant dense<0.000000e+00> : vector<8xf32>
    %138 = vector.multi_reduction <add>, %137, %cst_94 [1] : vector<8x16xf32> to vector<8xf32>
    %139 = vector.shape_cast %138 : vector<8xf32> to vector<8x1xf32>
    %c0_95 = arith.constant 0 : index
    %c31 = arith.constant 31 : index
    %140 = vector.load %arg7[%c0_95, %c31] : memref<8x64xf32, #tpu.memory_space<vmem>>, vector<8x1xf32>
    tpu.vector_store %arg7[%c0_95, %c31], %139 {strides = array<i32>} : memref<8x64xf32, #tpu.memory_space<vmem>>, vector<8x1xf32>,
    %c0_96 = arith.constant 0 : index
    %c59 = arith.constant 59 : index
    %141 = vector.load %arg7[%c0_96, %c59] : memref<8x64xf32, #tpu.memory_space<vmem>>, vector<8x1xf32>
    tpu.vector_store %arg7[%c0_96, %c59], %139 {strides = array<i32>} : memref<8x64xf32, #tpu.memory_space<vmem>>, vector<8x1xf32>,
    %142 = arith.mulf %9, %9 : vector<8x16xf32>
    %cst_97 = arith.constant dense<0.000000e+00> : vector<8xf32>
    %143 = vector.multi_reduction <add>, %142, %cst_97 [1] : vector<8x16xf32> to vector<8xf32>
    %144 = vector.shape_cast %143 : vector<8xf32> to vector<8x1xf32>
    %c0_98 = arith.constant 0 : index
    %c36 = arith.constant 36 : index
    %145 = vector.load %arg7[%c0_98, %c36] : memref<8x64xf32, #tpu.memory_space<vmem>>, vector<8x1xf32>
    tpu.vector_store %arg7[%c0_98, %c36], %144 {strides = array<i32>} : memref<8x64xf32, #tpu.memory_space<vmem>>, vector<8x1xf32>,
    %146 = arith.mulf %9, %11 : vector<8x16xf32>
    %cst_99 = arith.constant dense<0.000000e+00> : vector<8xf32>
    %147 = vector.multi_reduction <add>, %146, %cst_99 [1] : vector<8x16xf32> to vector<8xf32>
    %148 = vector.shape_cast %147 : vector<8xf32> to vector<8x1xf32>
    %c0_100 = arith.constant 0 : index
    %c37 = arith.constant 37 : index
    %149 = vector.load %arg7[%c0_100, %c37] : memref<8x64xf32, #tpu.memory_space<vmem>>, vector<8x1xf32>
    tpu.vector_store %arg7[%c0_100, %c37], %148 {strides = array<i32>} : memref<8x64xf32, #tpu.memory_space<vmem>>, vector<8x1xf32>,
    %c0_101 = arith.constant 0 : index
    %c44 = arith.constant 44 : index
    %150 = vector.load %arg7[%c0_101, %c44] : memref<8x64xf32, #tpu.memory_space<vmem>>, vector<8x1xf32>
    tpu.vector_store %arg7[%c0_101, %c44], %148 {strides = array<i32>} : memref<8x64xf32, #tpu.memory_space<vmem>>, vector<8x1xf32>,
    %151 = arith.mulf %9, %13 : vector<8x16xf32>
    %cst_102 = arith.constant dense<0.000000e+00> : vector<8xf32>
    %152 = vector.multi_reduction <add>, %151, %cst_102 [1] : vector<8x16xf32> to vector<8xf32>
    %153 = vector.shape_cast %152 : vector<8xf32> to vector<8x1xf32>
    %c0_103 = arith.constant 0 : index
    %c38 = arith.constant 38 : index
    %154 = vector.load %arg7[%c0_103, %c38] : memref<8x64xf32, #tpu.memory_space<vmem>>, vector<8x1xf32>
    tpu.vector_store %arg7[%c0_103, %c38], %153 {strides = array<i32>} : memref<8x64xf32, #tpu.memory_space<vmem>>, vector<8x1xf32>,
    %c0_104 = arith.constant 0 : index
    %c52 = arith.constant 52 : index
    %155 = vector.load %arg7[%c0_104, %c52] : memref<8x64xf32, #tpu.memory_space<vmem>>, vector<8x1xf32>
    tpu.vector_store %arg7[%c0_104, %c52], %153 {strides = array<i32>} : memref<8x64xf32, #tpu.memory_space<vmem>>, vector<8x1xf32>,
    %156 = arith.mulf %9, %15 : vector<8x16xf32>
    %cst_105 = arith.constant dense<0.000000e+00> : vector<8xf32>
    %157 = vector.multi_reduction <add>, %156, %cst_105 [1] : vector<8x16xf32> to vector<8xf32>
    %158 = vector.shape_cast %157 : vector<8xf32> to vector<8x1xf32>
    %c0_106 = arith.constant 0 : index
    %c39 = arith.constant 39 : index
    %159 = vector.load %arg7[%c0_106, %c39] : memref<8x64xf32, #tpu.memory_space<vmem>>, vector<8x1xf32>
    tpu.vector_store %arg7[%c0_106, %c39], %158 {strides = array<i32>} : memref<8x64xf32, #tpu.memory_space<vmem>>, vector<8x1xf32>,
    %c0_107 = arith.constant 0 : index
    %c60 = arith.constant 60 : index
    %160 = vector.load %arg7[%c0_107, %c60] : memref<8x64xf32, #tpu.memory_space<vmem>>, vector<8x1xf32>
    tpu.vector_store %arg7[%c0_107, %c60], %158 {strides = array<i32>} : memref<8x64xf32, #tpu.memory_space<vmem>>, vector<8x1xf32>,
    %161 = arith.mulf %11, %11 : vector<8x16xf32>
    %cst_108 = arith.constant dense<0.000000e+00> : vector<8xf32>
    %162 = vector.multi_reduction <add>, %161, %cst_108 [1] : vector<8x16xf32> to vector<8xf32>
    %163 = vector.shape_cast %162 : vector<8xf32> to vector<8x1xf32>
    %c0_109 = arith.constant 0 : index
    %c45 = arith.constant 45 : index
    %164 = vector.load %arg7[%c0_109, %c45] : memref<8x64xf32, #tpu.memory_space<vmem>>, vector<8x1xf32>
    tpu.vector_store %arg7[%c0_109, %c45], %163 {strides = array<i32>} : memref<8x64xf32, #tpu.memory_space<vmem>>, vector<8x1xf32>,
    %165 = arith.mulf %11, %13 : vector<8x16xf32>
    %cst_110 = arith.constant dense<0.000000e+00> : vector<8xf32>
    %166 = vector.multi_reduction <add>, %165, %cst_110 [1] : vector<8x16xf32> to vector<8xf32>
    %167 = vector.shape_cast %166 : vector<8xf32> to vector<8x1xf32>
    %c0_111 = arith.constant 0 : index
    %c46 = arith.constant 46 : index
    %168 = vector.load %arg7[%c0_111, %c46] : memref<8x64xf32, #tpu.memory_space<vmem>>, vector<8x1xf32>
    tpu.vector_store %arg7[%c0_111, %c46], %167 {strides = array<i32>} : memref<8x64xf32, #tpu.memory_space<vmem>>, vector<8x1xf32>,
    %c0_112 = arith.constant 0 : index
    %c53 = arith.constant 53 : index
    %169 = vector.load %arg7[%c0_112, %c53] : memref<8x64xf32, #tpu.memory_space<vmem>>, vector<8x1xf32>
    tpu.vector_store %arg7[%c0_112, %c53], %167 {strides = array<i32>} : memref<8x64xf32, #tpu.memory_space<vmem>>, vector<8x1xf32>,
    %170 = arith.mulf %11, %15 : vector<8x16xf32>
    %cst_113 = arith.constant dense<0.000000e+00> : vector<8xf32>
    %171 = vector.multi_reduction <add>, %170, %cst_113 [1] : vector<8x16xf32> to vector<8xf32>
    %172 = vector.shape_cast %171 : vector<8xf32> to vector<8x1xf32>
    %c0_114 = arith.constant 0 : index
    %c47 = arith.constant 47 : index
    %173 = vector.load %arg7[%c0_114, %c47] : memref<8x64xf32, #tpu.memory_space<vmem>>, vector<8x1xf32>
    tpu.vector_store %arg7[%c0_114, %c47], %172 {strides = array<i32>} : memref<8x64xf32, #tpu.memory_space<vmem>>, vector<8x1xf32>,
    %c0_115 = arith.constant 0 : index
    %c61 = arith.constant 61 : index
    %174 = vector.load %arg7[%c0_115, %c61] : memref<8x64xf32, #tpu.memory_space<vmem>>, vector<8x1xf32>
    tpu.vector_store %arg7[%c0_115, %c61], %172 {strides = array<i32>} : memref<8x64xf32, #tpu.memory_space<vmem>>, vector<8x1xf32>,
    %175 = arith.mulf %13, %13 : vector<8x16xf32>
    %cst_116 = arith.constant dense<0.000000e+00> : vector<8xf32>
    %176 = vector.multi_reduction <add>, %175, %cst_116 [1] : vector<8x16xf32> to vector<8xf32>
    %177 = vector.shape_cast %176 : vector<8xf32> to vector<8x1xf32>
    %c0_117 = arith.constant 0 : index
    %c54 = arith.constant 54 : index
    %178 = vector.load %arg7[%c0_117, %c54] : memref<8x64xf32, #tpu.memory_space<vmem>>, vector<8x1xf32>
    tpu.vector_store %arg7[%c0_117, %c54], %177 {strides = array<i32>} : memref<8x64xf32, #tpu.memory_space<vmem>>, vector<8x1xf32>,
    %179 = arith.mulf %13, %15 : vector<8x16xf32>
    %cst_118 = arith.constant dense<0.000000e+00> : vector<8xf32>
    %180 = vector.multi_reduction <add>, %179, %cst_118 [1] : vector<8x16xf32> to vector<8xf32>
    %181 = vector.shape_cast %180 : vector<8xf32> to vector<8x1xf32>
    %c0_119 = arith.constant 0 : index
    %c55 = arith.constant 55 : index
    %182 = vector.load %arg7[%c0_119, %c55] : memref<8x64xf32, #tpu.memory_space<vmem>>, vector<8x1xf32>
    tpu.vector_store %arg7[%c0_119, %c55], %181 {strides = array<i32>} : memref<8x64xf32, #tpu.memory_space<vmem>>, vector<8x1xf32>,
    %c0_120 = arith.constant 0 : index
    %c62 = arith.constant 62 : index
    %183 = vector.load %arg7[%c0_120, %c62] : memref<8x64xf32, #tpu.memory_space<vmem>>, vector<8x1xf32>
    tpu.vector_store %arg7[%c0_120, %c62], %181 {strides = array<i32>} : memref<8x64xf32, #tpu.memory_space<vmem>>, vector<8x1xf32>,
    %184 = arith.mulf %15, %15 : vector<8x16xf32>
    %cst_121 = arith.constant dense<0.000000e+00> : vector<8xf32>
    %185 = vector.multi_reduction <add>, %184, %cst_121 [1] : vector<8x16xf32> to vector<8xf32>
    %186 = vector.shape_cast %185 : vector<8xf32> to vector<8x1xf32>
    %c0_122 = arith.constant 0 : index
    %c63 = arith.constant 63 : index
    %187 = vector.load %arg7[%c0_122, %c63] : memref<8x64xf32, #tpu.memory_space<vmem>>, vector<8x1xf32>
    tpu.vector_store %arg7[%c0_122, %c63], %186 {strides = array<i32>} : memref<8x64xf32, #tpu.memory_space<vmem>>, vector<8x1xf32>,
    %c0_123 = arith.constant 0 : index
    %c0_124 = arith.constant 0 : index
    %188 = vector.load %arg1[%c0_123, %c0_124] : memref<8x128xf32, #tpu.memory_space<vmem>>, vector<8x128xf32>
    %c0_125 = arith.constant 0 : index
    %c0_126 = arith.constant 0 : index
    %189 = vector.load %arg3[%c0_125, %c0_126] : memref<128x128xf32, #tpu.memory_space<vmem>>, vector<128x128xf32>
    %cst_127 = arith.constant dense<0.000000e+00> : vector<8x128xf32>
    %190 = tpu.matmul %188, %189, %cst_127 {dimension_numbers = #tpu.dot_dimension_numbers<[1], [0], [0], [1], [0, 0, 1, 1], [], []>} : vector<8x128xf32>, vector<128x128xf32>, vector<8x128xf32> -> vector<8x128xf32>
    %c0_128 = arith.constant 0 : index
    %c0_129 = arith.constant 0 : index
    %191 = vector.load %arg7[%c0_128, %c0_129] : memref<8x64xf32, #tpu.memory_space<vmem>>, vector<8x64xf32>
    %c0_130 = arith.constant 0 : index
    %c0_131 = arith.constant 0 : index
    %192 = vector.load %arg4[%c0_130, %c0_131] : memref<64x128xf32, #tpu.memory_space<vmem>>, vector<64x128xf32>
    %cst_132 = arith.constant dense<0.000000e+00> : vector<8x128xf32>
    %193 = tpu.matmul %191, %192, %cst_132 {dimension_numbers = #tpu.dot_dimension_numbers<[1], [0], [0], [1], [0, 0, 1, 1], [], []>} : vector<8x64xf32>, vector<64x128xf32>, vector<8x128xf32> -> vector<8x128xf32>
    %194 = arith.addf %190, %193 : vector<8x128xf32>
    %c0_133 = arith.constant 0 : index
    %c0_134 = arith.constant 0 : index
    %195 = vector.load %arg5[%c0_133, %c0_134] : memref<1x128xf32, #tpu.memory_space<vmem>>, vector<1x128xf32>
    %196 = vector.broadcast %195 : vector<1x128xf32> to vector<8x128xf32>
    %197 = arith.addf %194, %196 : vector<8x128xf32>
    %c0_135 = arith.constant 0 : index
    %c0_136 = arith.constant 0 : index
    %198 = vector.load %arg6[%c0_135, %c0_136] : memref<8x128xf32, #tpu.memory_space<vmem>>, vector<8x128xf32>
    tpu.vector_store %arg6[%c0_135, %c0_136], %197 {strides = array<i32>} : memref<8x128xf32, #tpu.memory_space<vmem>>, vector<8x128xf32>,
    return
  }
  func.func @transform_0(%arg0: i32) -> (i32, i32) {
    %c0_i32 = arith.constant 0 : i32
    %c0_i32_0 = arith.constant 0 : i32
    return %arg0, %c0_i32 : i32, i32
  }
  func.func @transform_1(%arg0: i32) -> (i32, i32, i32) {
    %c0_i32 = arith.constant 0 : i32
    %c0_i32_0 = arith.constant 0 : i32
    %c0_i32_1 = arith.constant 0 : i32
    return %c0_i32, %arg0, %c0_i32_0 : i32, i32, i32
  }
  func.func @transform_2(%arg0: i32) -> (i32, i32) {
    %c0_i32 = arith.constant 0 : i32
    %c0_i32_0 = arith.constant 0 : i32
    %c0_i32_1 = arith.constant 0 : i32
    return %c0_i32, %c0_i32_0 : i32, i32
  }
  func.func @transform_3(%arg0: i32) -> (i32, i32) {
    %c0_i32 = arith.constant 0 : i32
    %c0_i32_0 = arith.constant 0 : i32
    %c0_i32_1 = arith.constant 0 : i32
    return %c0_i32, %c0_i32_0 : i32, i32
  }
  func.func @transform_4(%arg0: i32) -> (i32, i32) {
    %c0_i32 = arith.constant 0 : i32
    %c0_i32_0 = arith.constant 0 : i32
    %c0_i32_1 = arith.constant 0 : i32
    return %c0_i32, %c0_i32_0 : i32, i32
  }
  func.func @transform_5(%arg0: i32) -> (i32, i32) {
    %c0_i32 = arith.constant 0 : i32
    %c0_i32_0 = arith.constant 0 : i32
    return %arg0, %c0_i32 : i32, i32
  }
}

</mosaic_0001>

<llo_original>
// kernel: product_layer_forward.1
$region0: #{product_layer_forward.1}
  #allocation0 [shape = 'u32[]', space=smem, size = 0x4, offset = 0x4, fixed_abs, tag = 'smem constant byte address 0x4 - core index']
  #allocation1 [shape = 'u32[72,128]{1,0:T(1,128)}', space=vmem, size = 0x9000, scoped, tag = 'internal scratch']
  #allocation2 [shape = 'f32[8,64]{1,0:T(8,128)}', space=vmem, size = 0x1000, scoped, tag = 'scratch operand']
  %s0 = inlined_call_operand.vmem [shape: f32[8,128], index: 0, kind: input, shape index: {}]
  %s1 = inlined_call_operand.vmem [shape: f32[8,8,16], index: 1, kind: input, shape index: {}]
  %s2 = inlined_call_operand.vmem [shape: f32[128,128], index: 2, kind: input, shape index: {}]
  %s3 = inlined_call_operand.hbm [shape: f32[64,128], index: 3, kind: input, shape index: {}]
  %s4 = inlined_call_operand.vmem [shape: f32[1,128], index: 4, kind: input, shape index: {}]
  %s5 = inlined_call_operand.hbm [shape: f32[8,128], index: 5, kind: output, shape index: {}]
  %s6 = sld [smem:[#allocation0]]
  $region34: #{product_layer_forward.1} parent=0
    _
  %s8 = ssub.s32 1, %s6
  %s9 = scalar_select 0, %s8, %s6
  $region1: #{product_layer_forward.1} parent=0
    #allocation3 [shape = 'u8[32768]{0}', space=vmem, size = 0x8000, scoped, tag = 'input window, operand 3, single buffered']
    #allocation4 [shape = 's32[1]{0}', space=sflag, size = 0x4, scoped, tag = 'scoped memory for product_layer_forward.1']
    #allocation5 [shape = 's32[1]{0}', space=sflag, size = 0x4, scoped, tag = 'scoped memory for product_layer_forward.1']
    #allocation6 [shape = 'u8[4096]{0}', space=vmem, size = 0x1000, scoped, tag = 'output window, operand 0, single buffered']
    %10 = vsyncpa [#allocation4], 0
    %11 = vsyncpa [#allocation5], 0
    // Predicated region
    $region2: #{product_layer_forward.1} parent=1 // pred_check
      _
    $region3: #{product_layer_forward.1} parent=1 // pred_check_branch
      %13 = sbr.rel (0) target = $region5
    $region4: #{product_layer_forward.1} parent=1 // pred_region
      _
    $region5: #{product_layer_forward.1} parent=1 // pred_fallthru
      _
    // Predicated region
    $region6: #{product_layer_forward.1} parent=1 // pred_check
      _
    $region7: #{product_layer_forward.1} parent=1 // pred_check_branch
      %15 = sbr.rel (0) target = $region9
    $region8: #{product_layer_forward.1} parent=1 // pred_region
      _
    $region9: #{product_layer_forward.1} parent=1 // pred_fallthru
      _
    // Predicated region
    $region10: #{product_layer_forward.1} parent=1 // pred_check
      _
    $region11: #{product_layer_forward.1} parent=1 // pred_check_branch
      %17 = sbr.rel (0) target = $region13
    $region12: #{product_layer_forward.1} parent=1 // pred_region
      _
    $region13: #{product_layer_forward.1} parent=1 // pred_fallthru
      _
    // Predicated region
    $region14: #{product_layer_forward.1} parent=1 // pred_check
      _
    $region15: #{product_layer_forward.1} parent=1 // pred_check_branch
      %19 = sbr.rel (0) target = $region17
    $region16: #{product_layer_forward.1} parent=1 // pred_region
      %21 = vsyncadd [#allocation4], 0
      %s22 = sshll.u32 %s3, 4
      %s23 = int_to_ptr.hbm [resolvable:$true] %s22
      %s24 = sshll.u32 [#allocation3], 4
      %s25 = int_to_ptr.vmem [resolvable:$true] %s24
      %30 = dma.hbm_to_vmem [thread:$0]  %s23, 1024, %s25, [#allocation4], 128, 128, 8
    $region17: #{product_layer_forward.1} parent=1 // pred_fallthru
      _
    // Predicated region
    $region18: #{product_layer_forward.1} parent=1 // pred_check
      _
    $region19: #{product_layer_forward.1} parent=1 // pred_check_branch
      %32 = sbr.rel (0) target = $region21
    $region20: #{product_layer_forward.1} parent=1 // pred_region
      _
    $region21: #{product_layer_forward.1} parent=1 // pred_fallthru
      _
    // Predicated region
    $region22: #{product_layer_forward.1} parent=1 // pred_check
      _
    $region23: #{product_layer_forward.1} parent=1 // pred_check_branch
      %34 = sbr.rel (0) target = $region25
    $region24: #{product_layer_forward.1} parent=1 // pred_region
      %36 = dma.done [#allocation4], 1024
    $region25: #{product_layer_forward.1} parent=1 // pred_fallthru
      _
    %v37 = vld [vmem:[%s1] sm:$0xff]
    %s38 = scalar_lea.vmem %s1, 8
    %v39 = vld [vmem:[%s38] sm:$0xff]
    %s40 = scalar_lea.vmem %s1, 16
    %v41 = vld [vmem:[%s40] sm:$0xff]
    %s42 = scalar_lea.vmem %s1, 24
    %v43 = vld [vmem:[%s42] sm:$0xff]
    %s44 = scalar_lea.vmem %s1, 32
    %v45 = vld [vmem:[%s44] sm:$0xff]
    %s46 = scalar_lea.vmem %s1, 40
    %v47 = vld [vmem:[%s46] sm:$0xff]
    %s48 = scalar_lea.vmem %s1, 48
    %v49 = vld [vmem:[%s48] sm:$0xff]
    %s50 = scalar_lea.vmem %s1, 56
    %v51 = vld [vmem:[%s50] sm:$0xff]
    %v52 = vmul.f32 %v37, %v37
    %vm53 = vcmask 130048
    %v54 = vsel %vm53, %v52, 0.0
    %55 = vadd.xlane.f32.xlu0 %v54
    %v56 = vpop.xlane.xlu0 %55
    %vm57 = vcmask 7168
    %58 = vst.msk [vmem:[#allocation2] sm:$0xff] %vm57, %v56
    %v59 = vmul.f32 %v37, %v39
    %v60 = vsel %vm53, %v59, 0.0
    %61 = vadd.xlane.f32.xlu0 %v60
    %v62 = vpop.xlane.xlu0 %61
    %vm63 = vcmask 15368
    %64 = vst.msk [vmem:[#allocation2] sm:$0xff] %vm63, %v62
    %vm65 = vcmask 72768
    %66 = vst.msk [vmem:[#allocation2] sm:$0xff] %vm65, %v62
    %v67 = vmul.f32 %v37, %v41
    %v68 = vsel %vm53, %v67, 0.0
    %69 = vadd.xlane.f32.xlu0 %v68
    %v70 = vpop.xlane.xlu0 %69
    %vm71 = vcmask 23568
    %72 = vst.msk [vmem:[#allocation2] sm:$0xff] %vm71, %v70
    %vm73 = vcmask 138368
    %74 = vst.msk [vmem:[#allocation2] sm:$0xff] %vm73, %v70
    %v75 = vmul.f32 %v37, %v43
    %v76 = vsel %vm53, %v75, 0.0
    %77 = vadd.xlane.f32.xlu0 %v76
    %v78 = vpop.xlane.xlu0 %77
    %vm79 = vcmask 31768
    %80 = vst.msk [vmem:[#allocation2] sm:$0xff] %vm79, %v78
    %vm81 = vcmask 203968
    %82 = vst.msk [vmem:[#allocation2] sm:$0xff] %vm81, %v78
    %v83 = vmul.f32 %v37, %v45
    %v84 = vsel %vm53, %v83, 0.0
    %85 = vadd.xlane.f32.xlu0 %v84
    %v86 = vpop.xlane.xlu0 %85
    %vm87 = vcmask 39968
    %88 = vst.msk [vmem:[#allocation2] sm:$0xff] %vm87, %v86
    %vm89 = vcmask 269568
    %90 = vst.msk [vmem:[#allocation2] sm:$0xff] %vm89, %v86
    %v91 = vmul.f32 %v37, %v47
    %v92 = vsel %vm53, %v91, 0.0
    %93 = vadd.xlane.f32.xlu0 %v92
    %v94 = vpop.xlane.xlu0 %93
    %vm95 = vcmask 48168
    %96 = vst.msk [vmem:[#allocation2] sm:$0xff] %vm95, %v94
    %vm97 = vcmask 335168
    %98 = vst.msk [vmem:[#allocation2] sm:$0xff] %vm97, %v94
    %v99 = vmul.f32 %v37, %v49
    %v100 = vsel %vm53, %v99, 0.0
    %101 = vadd.xlane.f32.xlu0 %v100
    %v102 = vpop.xlane.xlu0 %101
    %vm103 = vcmask 56368
    %104 = vst.msk [vmem:[#allocation2] sm:$0xff] %vm103, %v102
    %vm105 = vcmask 400768
    %106 = vst.msk [vmem:[#allocation2] sm:$0xff] %vm105, %v102
    %v107 = vmul.f32 %v37, %v51
    %v108 = vsel %vm53, %v107, 0.0
    %109 = vadd.xlane.f32.xlu0 %v108
    %v110 = vpop.xlane.xlu0 %109
    %vm111 = vcmask 64568
    %112 = vst.msk [vmem:[#allocation2] sm:$0xff] %vm111, %v110
    %vm113 = vcmask 466368
    %114 = vst.msk [vmem:[#allocation2] sm:$0xff] %vm113, %v110
    %v115 = vmul.f32 %v39, %v39
    %v116 = vsel %vm53, %v115, 0.0
    %117 = vadd.xlane.f32.xlu0 %v116
    %v118 = vpop.xlane.xlu0 %117
    %vm119 = vcmask 80968
    %120 = vst.msk [vmem:[#allocation2] sm:$0xff] %vm119, %v118
    %v121 = vmul.f32 %v39, %v41
    %v122 = vsel %vm53, %v121, 0.0
    %123 = vadd.xlane.f32.xlu0 %v122
    %v124 = vpop.xlane.xlu0 %123
    %vm125 = vcmask 89168
    %126 = vst.msk [vmem:[#allocation2] sm:$0xff] %vm125, %v124
    %vm127 = vcmask 146568
    %128 = vst.msk [vmem:[#allocation2] sm:$0xff] %vm127, %v124
    %v129 = vmul.f32 %v39, %v43
    %v130 = vsel %vm53, %v129, 0.0
    %131 = vadd.xlane.f32.xlu0 %v130
    %v132 = vpop.xlane.xlu0 %131
    %vm133 = vcmask 97368
    %134 = vst.msk [vmem:[#allocation2] sm:$0xff] %vm133, %v132
    %vm135 = vcmask 212168
    %136 = vst.msk [vmem:[#allocation2] sm:$0xff] %vm135, %v132
    %v137 = vmul.f32 %v39, %v45
    %v138 = vsel %vm53, %v137, 0.0
    %139 = vadd.xlane.f32.xlu0 %v138
    %v140 = vpop.xlane.xlu0 %139
    %vm141 = vcmask 105568
    %142 = vst.msk [vmem:[#allocation2] sm:$0xff] %vm141, %v140
    %vm143 = vcmask 277768
    %144 = vst.msk [vmem:[#allocation2] sm:$0xff] %vm143, %v140
    %v145 = vmul.f32 %v39, %v47
    %v146 = vsel %vm53, %v145, 0.0
    %147 = vadd.xlane.f32.xlu0 %v146
    %v148 = vpop.xlane.xlu0 %147
    %vm149 = vcmask 113768
    %150 = vst.msk [vmem:[#allocation2] sm:$0xff] %vm149, %v148
    %vm151 = vcmask 343368
    %152 = vst.msk [vmem:[#allocation2] sm:$0xff] %vm151, %v148
    %v153 = vmul.f32 %v39, %v49
    %v154 = vsel %vm53, %v153, 0.0
    %155 = vadd.xlane.f32.xlu0 %v154
    %v156 = vpop.xlane.xlu0 %155
    %vm157 = vcmask 121968
    %158 = vst.msk [vmem:[#allocation2] sm:$0xff] %vm157, %v156
    %vm159 = vcmask 408968
    %160 = vst.msk [vmem:[#allocation2] sm:$0xff] %vm159, %v156
    %v161 = vmul.f32 %v39, %v51
    %v162 = vsel %vm53, %v161, 0.0
    %163 = vadd.xlane.f32.xlu0 %v162
    %v164 = vpop.xlane.xlu0 %163
    %vm165 = vcmask 130168
    %166 = vst.msk [vmem:[#allocation2] sm:$0xff] %vm165, %v164
    %vm167 = vcmask 474568
    %168 = vst.msk [vmem:[#allocation2] sm:$0xff] %vm167, %v164
    %v169 = vmul.f32 %v41, %v41
    %v170 = vsel %vm53, %v169, 0.0
    %171 = vadd.xlane.f32.xlu0 %v170
    %v172 = vpop.xlane.xlu0 %171
    %vm173 = vcmask 154768
    %174 = vst.msk [vmem:[#allocation2] sm:$0xff] %vm173, %v172
    %v175 = vmul.f32 %v41, %v43
    %v176 = vsel %vm53, %v175, 0.0
    %177 = vadd.xlane.f32.xlu0 %v176
    %v178 = vpop.xlane.xlu0 %177
    %vm179 = vcmask 162968
    %180 = vst.msk [vmem:[#allocation2] sm:$0xff] %vm179, %v178
    %vm181 = vcmask 220368
    %182 = vst.msk [vmem:[#allocation2] sm:$0xff] %vm181, %v178
    %v183 = vmul.f32 %v41, %v45
    %v184 = vsel %vm53, %v183, 0.0
    %185 = vadd.xlane.f32.xlu0 %v184
    %v186 = vpop.xlane.xlu0 %185
    %vm187 = vcmask 171168
    %188 = vst.msk [vmem:[#allocation2] sm:$0xff] %vm187, %v186
    %vm189 = vcmask 285968
    %190 = vst.msk [vmem:[#allocation2] sm:$0xff] %vm189, %v186
    %v191 = vmul.f32 %v41, %v47
    %v192 = vsel %vm53, %v191, 0.0
    %193 = vadd.xlane.f32.xlu0 %v192
    %v194 = vpop.xlane.xlu0 %193
    %vm195 = vcmask 179368
    %196 = vst.msk [vmem:[#allocation2] sm:$0xff] %vm195, %v194
    %vm197 = vcmask 351568
    %198 = vst.msk [vmem:[#allocation2] sm:$0xff] %vm197, %v194
    %v199 = vmul.f32 %v41, %v49
    %v200 = vsel %vm53, %v199, 0.0
    %201 = vadd.xlane.f32.xlu0 %v200
    %v202 = vpop.xlane.xlu0 %201
    %vm203 = vcmask 187568
    %204 = vst.msk [vmem:[#allocation2] sm:$0xff] %vm203, %v202
    %vm205 = vcmask 417168
    %206 = vst.msk [vmem:[#allocation2] sm:$0xff] %vm205, %v202
    %v207 = vmul.f32 %v41, %v51
    %v208 = vsel %vm53, %v207, 0.0
    %209 = vadd.xlane.f32.xlu0 %v208
    %v210 = vpop.xlane.xlu0 %209
    %vm211 = vcmask 195768
    %212 = vst.msk [vmem:[#allocation2] sm:$0xff] %vm211, %v210
    %vm213 = vcmask 482768
    %214 = vst.msk [vmem:[#allocation2] sm:$0xff] %vm213, %v210
    %v215 = vmul.f32 %v43, %v43
    %v216 = vsel %vm53, %v215, 0.0
    %217 = vadd.xlane.f32.xlu0 %v216
    %v218 = vpop.xlane.xlu0 %217
    %vm219 = vcmask 228568
    %220 = vst.msk [vmem:[#allocation2] sm:$0xff] %vm219, %v218
    %v221 = vmul.f32 %v43, %v45
    %v222 = vsel %vm53, %v221, 0.0
    %223 = vadd.xlane.f32.xlu0 %v222
    %v224 = vpop.xlane.xlu0 %223
    %vm225 = vcmask 236768
    %226 = vst.msk [vmem:[#allocation2] sm:$0xff] %vm225, %v224
    %vm227 = vcmask 294168
    %228 = vst.msk [vmem:[#allocation2] sm:$0xff] %vm227, %v224
    %v229 = vmul.f32 %v43, %v47
    %v230 = vsel %vm53, %v229, 0.0
    %231 = vadd.xlane.f32.xlu0 %v230
    %v232 = vpop.xlane.xlu0 %231
    %vm233 = vcmask 244968
    %234 = vst.msk [vmem:[#allocation2] sm:$0xff] %vm233, %v232
    %vm235 = vcmask 359768
    %236 = vst.msk [vmem:[#allocation2] sm:$0xff] %vm235, %v232
    %v237 = vmul.f32 %v43, %v49
    %v238 = vsel %vm53, %v237, 0.0
    %239 = vadd.xlane.f32.xlu0 %v238
    %v240 = vpop.xlane.xlu0 %239
    %vm241 = vcmask 253168
    %242 = vst.msk [vmem:[#allocation2] sm:$0xff] %vm241, %v240
    %vm243 = vcmask 425368
    %244 = vst.msk [vmem:[#allocation2] sm:$0xff] %vm243, %v240
    %v245 = vmul.f32 %v43, %v51
    %v246 = vsel %vm53, %v245, 0.0
    %247 = vadd.xlane.f32.xlu0 %v246
    %v248 = vpop.xlane.xlu0 %247
    %vm249 = vcmask 261368
    %250 = vst.msk [vmem:[#allocation2] sm:$0xff] %vm249, %v248
    %vm251 = vcmask 490968
    %252 = vst.msk [vmem:[#allocation2] sm:$0xff] %vm251, %v248
    %v253 = vmul.f32 %v45, %v45
    %v254 = vsel %vm53, %v253, 0.0
    %255 = vadd.xlane.f32.xlu0 %v254
    %v256 = vpop.xlane.xlu0 %255
    %vm257 = vcmask 302368
    %258 = vst.msk [vmem:[#allocation2] sm:$0xff] %vm257, %v256
    %v259 = vmul.f32 %v45, %v47
    %v260 = vsel %vm53, %v259, 0.0
    %261 = vadd.xlane.f32.xlu0 %v260
    %v262 = vpop.xlane.xlu0 %261
    %vm263 = vcmask 310568
    %264 = vst.msk [vmem:[#allocation2] sm:$0xff] %vm263, %v262
    %vm265 = vcmask 367968
    %266 = vst.msk [vmem:[#allocation2] sm:$0xff] %vm265, %v262
    %v267 = vmul.f32 %v45, %v49
    %v268 = vsel %vm53, %v267, 0.0
    %269 = vadd.xlane.f32.xlu0 %v268
    %v270 = vpop.xlane.xlu0 %269
    %vm271 = vcmask 318768
    %272 = vst.msk [vmem:[#allocation2] sm:$0xff] %vm271, %v270
    %vm273 = vcmask 433568
    %274 = vst.msk [vmem:[#allocation2] sm:$0xff] %vm273, %v270
    %v275 = vmul.f32 %v45, %v51
    %v276 = vsel %vm53, %v275, 0.0
    %277 = vadd.xlane.f32.xlu0 %v276
    %v278 = vpop.xlane.xlu0 %277
    %vm279 = vcmask 326968
    %280 = vst.msk [vmem:[#allocation2] sm:$0xff] %vm279, %v278
    %vm281 = vcmask 499168
    %282 = vst.msk [vmem:[#allocation2] sm:$0xff] %vm281, %v278
    %v283 = vmul.f32 %v47, %v47
    %v284 = vsel %vm53, %v283, 0.0
    %285 = vadd.xlane.f32.xlu0 %v284
    %v286 = vpop.xlane.xlu0 %285
    %vm287 = vcmask 376168
    %288 = vst.msk [vmem:[#allocation2] sm:$0xff] %vm287, %v286
    %v289 = vmul.f32 %v47, %v49
    %v290 = vsel %vm53, %v289, 0.0
    %291 = vadd.xlane.f32.xlu0 %v290
    %v292 = vpop.xlane.xlu0 %291
    %vm293 = vcmask 384368
    %294 = vst.msk [vmem:[#allocation2] sm:$0xff] %vm293, %v292
    %vm295 = vcmask 441768
    %296 = vst.msk [vmem:[#allocation2] sm:$0xff] %vm295, %v292
    %v297 = vmul.f32 %v47, %v51
    %v298 = vsel %vm53, %v297, 0.0
    %299 = vadd.xlane.f32.xlu0 %v298
    %v300 = vpop.xlane.xlu0 %299
    %vm301 = vcmask 392568
    %302 = vst.msk [vmem:[#allocation2] sm:$0xff] %vm301, %v300
    %vm303 = vcmask 507368
    %304 = vst.msk [vmem:[#allocation2] sm:$0xff] %vm303, %v300
    %v305 = vmul.f32 %v49, %v49
    %v306 = vsel %vm53, %v305, 0.0
    %307 = vadd.xlane.f32.xlu0 %v306
    %v308 = vpop.xlane.xlu0 %307
    %vm309 = vcmask 449968
    %310 = vst.msk [vmem:[#allocation2] sm:$0xff] %vm309, %v308
    %v311 = vmul.f32 %v49, %v51
    %v312 = vsel %vm53, %v311, 0.0
    %313 = vadd.xlane.f32.xlu0 %v312
    %v314 = vpop.xlane.xlu0 %313
    %vm315 = vcmask 458168
    %316 = vst.msk [vmem:[#allocation2] sm:$0xff] %vm315, %v314
    %vm317 = vcmask 515568
    %318 = vst.msk [vmem:[#allocation2] sm:$0xff] %vm317, %v314
    %v319 = vmul.f32 %v51, %v51
    %v320 = vsel %vm53, %v319, 0.0
    %321 = vadd.xlane.f32.xlu0 %v320
    %v322 = vpop.xlane.xlu0 %321
    %vm323 = vcmask 523768
    %324 = vst.msk [vmem:[#allocation2] sm:$0xff] %vm323, %v322
    %v325 = vld [vmem:[%s0] sm:$0xff]
    %v326 = vld [vmem:[%s2] sm:$0xff]
    %v327 = vld [vmem:[%s2 + $0x8] sm:$0xff]
    %v328 = vld [vmem:[%s2 + $0x10] sm:$0xff]
    %v329 = vld [vmem:[%s2 + $0x18] sm:$0xff]
    %v330 = vld [vmem:[%s2 + $0x20] sm:$0xff]
    %v331 = vld [vmem:[%s2 + $0x28] sm:$0xff]
    %v332 = vld [vmem:[%s2 + $0x30] sm:$0xff]
    %v333 = vld [vmem:[%s2 + $0x38] sm:$0xff]
    %v334 = vld [vmem:[%s2 + $0x40] sm:$0xff]
    %v335 = vld [vmem:[%s2 + $0x48] sm:$0xff]
    %v336 = vld [vmem:[%s2 + $0x50] sm:$0xff]
    %v337 = vld [vmem:[%s2 + $0x58] sm:$0xff]
    %v338 = vld [vmem:[%s2 + $0x60] sm:$0xff]
    %v339 = vld [vmem:[%s2 + $0x68] sm:$0xff]
    %v340 = vld [vmem:[%s2 + $0x70] sm:$0xff]
    %v341 = vld [vmem:[%s2 + $0x78] sm:$0xff]
    %v342 = vld [vmem:[#allocation2] sm:$0xff]
    %v343 = vld [vmem:[#allocation3] sm:$0xff]
    %v344 = vld [vmem:[#allocation3 + $0x8] sm:$0xff]
    %v345 = vld [vmem:[#allocation3 + $0x10] sm:$0xff]
    %v346 = vld [vmem:[#allocation3 + $0x18] sm:$0xff]
    %v347 = vld [vmem:[#allocation3 + $0x20] sm:$0xff]
    %v348 = vld [vmem:[#allocation3 + $0x28] sm:$0xff]
    %v349 = vld [vmem:[#allocation3 + $0x30] sm:$0xff]
    %v350 = vld [vmem:[#allocation3 + $0x38] sm:$0xff]
    %vm351 = vcmask 523264
    %v353 = vsel %vm351, %v342, 0
    %355 = vmatpush.msra.mxu0 0.0
    %356 = vmatpush.msra.mxu0 0.0
    %357 = vmatpush.msra.mxu0 0.0
    %358 = vmatpush.msra.mxu0 0.0
    %359 = vmatpush.msra.mxu0 0.0
    %360 = vmatpush.msra.mxu0 0.0
    %361 = vmatpush.msra.mxu0 0.0
    %362 = vmatpush.msra.mxu0 0.0
    %363 = vmatpush.msra.mxu0 %v350
    %364 = vmatpush.msra.mxu0 %v349
    %365 = vmatpush.msra.mxu0 %v348
    %366 = vmatpush.msra.mxu0 %v347
    %367 = vmatpush.msra.mxu0 %v346
    %368 = vmatpush.msra.mxu0 %v345
    %369 = vmatpush.msra.mxu0 %v344
    %370 = vmatpush.msra.mxu0 %v343
    %371 = vmatmul.f32.gmra.mxu0 %v353
    %v372 = vpop.f32.mrf.mxu0
    %v373 = vadd.f32 0.0, %v372
    %374 = vdwg.mxu0
    %375 = vmatpush.msra.mxu0 %v341
    %376 = vmatpush.msra.mxu0 %v340
    %377 = vmatpush.msra.mxu0 %v339
    %378 = vmatpush.msra.mxu0 %v338
    %379 = vmatpush.msra.mxu0 %v337
    %380 = vmatpush.msra.mxu0 %v336
    %381 = vmatpush.msra.mxu0 %v335
    %382 = vmatpush.msra.mxu0 %v334
    %383 = vmatpush.msra.mxu0 %v333
    %384 = vmatpush.msra.mxu0 %v332
    %385 = vmatpush.msra.mxu0 %v331
    %386 = vmatpush.msra.mxu0 %v330
    %387 = vmatpush.msra.mxu0 %v329
    %388 = vmatpush.msra.mxu0 %v328
    %389 = vmatpush.msra.mxu0 %v327
    %390 = vmatpush.msra.mxu0 %v326
    %391 = vmatmul.f32.gmra.mxu0 %v325
    %v392 = vpop.f32.mrf.mxu0
    %v393 = vadd.f32 %v373, %v392
    %394 = vdwg.mxu0
    %v395 = vld [vmem:[%s4] sm:$0x1]
    %v397 = vperm.slane %v395, 0
    %v399 = vadd.f32 %v393, %v397
    %400 = vst [vmem:[#allocation6] sm:$0xff] %v399
    // Predicated region
    $region26: #{product_layer_forward.1} parent=1 // pred_check
      _
    $region27: #{product_layer_forward.1} parent=1 // pred_check_branch
      %402 = sbr.rel (0) target = $region29
    $region28: #{product_layer_forward.1} parent=1 // pred_region
      %404 = vsyncadd [#allocation5], 0
      %s406 = sshll.u32 [#allocation6], 4
      %s407 = int_to_ptr.vmem [resolvable:$true] %s406
      %s408 = sshll.u32 %s5, 4
      %s409 = int_to_ptr.hbm [resolvable:$true] %s408
      %411 = dma.vmem_to_hbm [thread:$0]  %s407, 128, %s409, [#allocation5]
    $region29: #{product_layer_forward.1} parent=1 // pred_fallthru
      _
    // Predicated region
    $region30: #{product_layer_forward.1} parent=1 // pred_check
      _
    $region31: #{product_layer_forward.1} parent=1 // pred_check_branch
      %413 = sbr.rel (0) target = $region33
    $region32: #{product_layer_forward.1} parent=1 // pred_region
      %415 = dma.done [#allocation5], 128
    $region33: #{product_layer_forward.1} parent=1 // pred_fallthru
      _
    %416 = vsyncpa [#allocation4], 1
    %417 = vsyncpa [#allocation5], 1

</llo_original>
